<compile_context>
chip_gen: v7x
topology: tpu7x:2x2x1
jax: 0.10.0
libtpu: 0.0.40
codegen_flags: <defaults>
</compile_context>

<pallas_src>
import functools
import math

import jax
import jax.numpy as jnp
from jax import lax
from jax.experimental import pallas as pl
from jax.experimental.pallas import tpu as pltpu


def _round_up(x, m):
    return ((x + m - 1) // m) * m


def _round_down(x, m):
    return (x // m) * m


def _sublane_pack(dtype):
    # native sublane packing: 8 for 4-byte, 16 for 2-byte, 32 for 1-byte dtypes
    return {4: 8, 2: 16, 1: 32}.get(jnp.dtype(dtype).itemsize, 8)


def _vmem_capacity_bytes():
    try:
        return int(pltpu.get_tpu_info().vmem_capacity_bytes)
    except Exception:
        return 64 * 1024 * 1024  # conservative fallback (v7x per-core VMEM)


# ----------------------------------------------------------------------------
# Kernel 1: streaming time-sum over axis 0 of a lane-dense (T, F) array.
# ----------------------------------------------------------------------------
def _build_time_sum_kernel(T, F, tT, tF, sps, mask_rows, mask_lanes):
    def kernel(x_ref, o_ref, acc_ref):
        f = pl.program_id(0)          # F block            (parallel)
        s = pl.program_id(1)          # reduction slab     (parallel, v7x 2-TC)
        t = pl.program_id(2)          # T step within slab (arbitrary)

        x = x_ref[...]
        if mask_rows or mask_lanes:
            keep = None
            if mask_rows:
                # logical global T-block index (may point past the last real
                # block for the overhang step of the last slab -> fully masked)
                g = s * sps + t
                rows = g * tT + lax.broadcasted_iota(jnp.int32, (tT, tF), 0)
                keep = rows < T
            if mask_lanes:
                lanes = f * tF + lax.broadcasted_iota(jnp.int32, (tT, tF), 1)
                lk = lanes < F
                keep = lk if keep is None else jnp.logical_and(keep, lk)
            x = jnp.where(keep, x, jnp.zeros((), x.dtype))

        part = jnp.sum(x, axis=0, keepdims=True, dtype=jnp.float32)

        @pl.when(t == 0)
        def _init():                  # first step: store (no read-add)
            acc_ref[...] = part

        @pl.when(t > 0)
        def _accum():
            acc_ref[...] += part

        @pl.when(t == pl.num_programs(2) - 1)
        def _finalize():
            o_ref[...] = acc_ref[...]

    return kernel


def _time_mean_pallas(x2, vmem_budget_bytes=None):
    """Mean over axis 0 of a 2-D (T, F) array -> (F,) float32."""
    T, F = x2.shape
    itemsize = jnp.dtype(x2.dtype).itemsize
    pack = _sublane_pack(x2.dtype)

    vmem_cap = _vmem_capacity_bytes()
    # budget for the streamed, double-buffered x tiles (+ in-kernel temps)
    x_budget = (int(vmem_budget_bytes) if vmem_budget_bytes
                else max(8 << 20, int(vmem_cap * 0.4)))

    F_vmem = _round_up(F, 128)        # lane padding of a VMEM tile

    # --- lane (F) tiling: prefer one contiguous full-row block ---------------
    if F <= 128 or 2 * pack * F_vmem * itemsize <= x_budget:
        tF, n_fb, mask_lanes = F, 1, False
    else:
        lane_cap = max(128, _round_down(x_budget // (2 * pack * itemsize), 128))
        tF = min(lane_cap, _round_down(F, 128))
        n_fb = pl.cdiv(F, tF)
        mask_lanes = (F % tF) != 0
    tF_vmem = _round_up(tF, 128)

    # --- time (T) tiling: biggest block fitting the (padding-aware) budget ---
    # 2 double-buffered x tiles + ~2 block-sized f32 temporaries per block row
    per_row = 2 * tF_vmem * itemsize + 2 * tF_vmem * 4
    rows_budget = max(pack, _round_down(x_budget // per_row, pack))
    if T <= rows_budget:
        tT = T                        # single step, no boundary masking
    else:
        tT = None
        d = rows_budget               # prefer an exact divisor (mask-free)
        while d >= pack:
            if T % d == 0:
                tT = d
                break
            d -= pack
        if tT is None or tT * 2 < rows_budget:
            tT = rows_budget          # take the big block, mask the tail
    n_tb = pl.cdiv(T, tT)             # number of real T blocks

    # --- split the reduction into 2 parallel slabs (v7x megacore) ------------
    n_slab = 2 if (n_fb == 1 and n_tb >= 4) else 1
    sps = pl.cdiv(n_tb, n_slab)       # T blocks per slab
    covered = n_slab * sps * tT
    mask_rows = covered > T
    clamp = (n_slab * sps) > n_tb     # last slab has an overhang step

    if clamp:
        x_map = lambda f, s, t: (jnp.minimum(s * sps + t, n_tb - 1), f)
    else:
        x_map = lambda f, s, t: (s * sps + t, f)

    out_F = n_fb * tF
    kernel = _build_time_sum_kernel(T, F, tT, tF, sps, mask_rows, mask_lanes)

    tT_vmem = _round_up(tT, pack)
    need = (2 * tT_vmem * tF_vmem * itemsize    # double-buffered x tiles
            + 2 * tT_vmem * tF_vmem * 4         # in-kernel temporaries
            + 2 * 8 * tF_vmem * 4               # output blocks
            + 8 * tF_vmem * 4)                  # accumulator scratch
    vmem_limit = int(min(vmem_cap * 0.85, max(2 * need, 32 << 20)))

    cost = pl.CostEstimate(
        flops=n_fb * n_slab * sps * tT * tF,
        transcendentals=0,
        bytes_accessed=x2.size * itemsize + n_slab * out_F * 4)

    sums = pl.pallas_call(
        kernel,
        out_shape=jax.ShapeDtypeStruct((n_slab, out_F), jnp.float32),
        grid_spec=pltpu.PrefetchScalarGridSpec(
            num_scalar_prefetch=0,
            grid=(n_fb, n_slab, sps),
            in_specs=[pl.BlockSpec((tT, tF), x_map)],
            out_specs=pl.BlockSpec((1, tF), lambda f, s, t: (s, f)),
            scratch_shapes=[pltpu.VMEM((1, tF), jnp.float32)],
        ),
        compiler_params=pltpu.CompilerParams(
            dimension_semantics=("parallel", "parallel", "arbitrary"),
            vmem_limit_bytes=vmem_limit),
        cost_estimate=cost,
    )(x2)

    total = jnp.sum(sums, axis=0)     # combine slab partial sums (tiny)
    return total[:F] * (1.0 / T)      # (F,) float32 time-mean


# ----------------------------------------------------------------------------
# Kernel 2: tiny Linear head on lane-aligned padded operands.
# ----------------------------------------------------------------------------
def _linear_kernel(x_ref, w_ref, b_ref, o_ref):
    o_ref[...] = (jnp.dot(x_ref[...], w_ref[...],
                          preferred_element_type=jnp.float32)
                  + b_ref[...]).astype(o_ref.dtype)


def _linear_pallas(x, weight, bias):
    """y = x @ weight.T + bias  (torch.nn.Linear layout: weight (O, D))."""
    B, D = x.shape
    O = weight.shape[0]
    # Only the tiny post-reduction operands are padded (never the big x).
    B8 = _round_up(max(B, 1), 8)
    Dp = _round_up(max(D, 1), 128)
    Op = _round_up(max(O, 1), 128)

    x_p = jnp.pad(x.astype(jnp.float32), ((0, B8 - B), (0, Dp - D)))
    w_p = jnp.pad(weight.astype(jnp.float32).T, ((0, Dp - D), (0, Op - O)))
    b_p = jnp.pad(bias.astype(jnp.float32).reshape(1, O), ((0, 0), (0, Op - O)))

    out = pl.pallas_call(
        _linear_kernel,
        out_shape=jax.ShapeDtypeStruct((B8, Op), jnp.float32),
    )(x_p, w_p, b_p)
    return out[:B, :O]


# ----------------------------------------------------------------------------
# Readout forward: squeeze -> mean(dim=0) -> Linear -> unsqueeze(0)
# ----------------------------------------------------------------------------
@functools.partial(jax.jit, static_argnames=("vmem_budget_bytes",))
def readout_forward(inputs, weight, bias, *, vmem_budget_bytes=None):
    x = jnp.squeeze(inputs)
    # A 1-D result would make the Linear input dim degenerate -> hard error.
    assert x.ndim >= 2, f"Readout expects >=2 non-singleton dims, got {x.shape}"

    T = x.shape[0]
    D = x.shape[-1]
    mid_shape = x.shape[1:-1]
    B = math.prod(mid_shape) if mid_shape else 1
    F = B * D

    O = weight.shape[0]
    assert weight.shape[1] == D, (weight.shape, D)

    # Lane-dense view: free reshape, no HBM copy, contiguous (tT, F) streaming.
    x2 = x.reshape(T, F)
    mean = _time_mean_pallas(x2, vmem_budget_bytes)        # (F,) f32
    y = _linear_pallas(mean.reshape(B, D), weight, bias)   # (B, O)
    return y.reshape((1,) + mid_shape + (O,))              # unsqueeze(0)


if __name__ == "__main__":
    key = jax.random.PRNGKey(0)
    k_x, k_w, k_b, k_y, k_z = jax.random.split(key, 5)

    # --- test 1: generic shapes (T=8, batch B=2, hidden D=32, O=10) ----------
    T, B, D, O = 8, 2, 32, 10
    x = jax.random.normal(k_x, (1, T, B, D), dtype=jnp.float32)
    bound = 1.0 / jnp.sqrt(D)
    weight = jax.random.uniform(k_w, (O, D), minval=-bound, maxval=bound,
                                dtype=jnp.float32)
    bias = jax.random.uniform(k_b, (O,), minval=-bound, maxval=bound,
                              dtype=jnp.float32)
    out = jax.block_until_ready(readout_forward(x, weight, bias))
    ref = (jnp.mean(jnp.squeeze(x), axis=0) @ weight.T + bias)[None, ...]
    assert out.shape == (1, B, O), out.shape
    assert jnp.allclose(out, ref, atol=1e-5, rtol=1e-5)

    # --- test 2: EGNN readout shape (batch, num_atoms, 4, 1), Linear(4, 1) ---
    Be, A, De, Oe = 8, 16, 4, 1
    x2 = jax.random.normal(k_y, (Be, A, De, 1), dtype=jnp.float32)
    w2 = jax.random.uniform(k_w, (Oe, De), minval=-0.5, maxval=0.5,
                            dtype=jnp.float32)
    b2 = jax.random.uniform(k_b, (Oe,), minval=-0.5, maxval=0.5,
                            dtype=jnp.float32)
    out2 = jax.block_until_ready(readout_forward(x2, w2, b2))
    ref2 = (jnp.mean(jnp.squeeze(x2), axis=0) @ w2.T + b2)[None, ...]
    assert out2.shape == (1, A, Oe), out2.shape
    assert jnp.allclose(out2, ref2, atol=1e-5, rtol=1e-5)

    # --- test 3: exercise the multi-step / slab / boundary-mask path ---------
    # (small data, but a tiny VMEM budget forces tT < T, 2 slabs and masking)
    T3, B3, D3, O3 = 100, 5, 8, 3
    x3 = jax.random.normal(k_z, (T3, B3, D3), dtype=jnp.float32)
    w3 = jax.random.uniform(k_w, (O3, D3), minval=-0.5, maxval=0.5,
                            dtype=jnp.float32)
    b3 = jax.random.uniform(k_b, (O3,), minval=-0.5, maxval=0.5,
                            dtype=jnp.float32)
    out3 = jax.block_until_ready(
        readout_forward(x3, w3, b3, vmem_budget_bytes=6144))
    ref3 = (jnp.mean(x3, axis=0) @ w3.T + b3)[None, ...]
    assert out3.shape == (1, B3, O3), out3.shape
    assert jnp.allclose(out3, ref3, atol=1e-5, rtol=1e-5)

    print("KERNEL_OK")
</pallas_src>

<mosaic_0001>
module attributes {stable_mosaic.version = 11 : i64} {
  func.func @kernel(%arg0: i32, %arg1: i32, %arg2: i32, %arg3: memref<8x64xf32, #tpu.memory_space<vmem>>, %arg4: memref<1x64xf32, #tpu.memory_space<vmem>>, %arg5: memref<1x64xf32, #tpu.memory_space<vmem>>) attributes {dimension_semantics = [#tpu.dimension_semantics<parallel>, #tpu.dimension_semantics<parallel>, #tpu.dimension_semantics<arbitrary>], iteration_bounds = array<i64: 1, 1, 1>, scalar_prefetch = 0 : i64, scratch_operands = 1 : i64, tpu.core_type = #tpu.core_type<tc>, window_params = [{transform_indices = @transform_0, window_bounds = array<i64: 8, 64>}, {transform_indices = @transform_1, window_bounds = array<i64: 1, 64>}]} {
    %c0 = arith.constant 0 : index
    %c0_0 = arith.constant 0 : index
    %0 = vector.load %arg3[%c0, %c0_0] : memref<8x64xf32, #tpu.memory_space<vmem>>, vector<8x64xf32>
    %cst = arith.constant dense<0.000000e+00> : vector<64xf32>
    %1 = vector.multi_reduction <add>, %0, %cst [0] : vector<8x64xf32> to vector<64xf32>
    %2 = vector.shape_cast %1 : vector<64xf32> to vector<1x64xf32>
    %c0_i32 = arith.constant 0 : i32
    %3 = arith.cmpi eq, %arg2, %c0_i32 : i32
    %4 = arith.extui %3 : i1 to i32
    %c0_i32_1 = arith.constant 0 : i32
    %5 = arith.cmpi ne, %4, %c0_i32_1 : i32
    scf.if %5 {
      %c0_6 = arith.constant 0 : index
      %c0_7 = arith.constant 0 : index
      %12 = vector.load %arg5[%c0_6, %c0_7] : memref<1x64xf32, #tpu.memory_space<vmem>>, vector<1x64xf32>
      tpu.vector_store %arg5[%c0_6, %c0_7], %2 {strides = array<i32>} : memref<1x64xf32, #tpu.memory_space<vmem>>, vector<1x64xf32>,
    } else {
    }
    %c0_i32_2 = arith.constant 0 : i32
    %6 = arith.cmpi sgt, %arg2, %c0_i32_2 : i32
    %7 = arith.extui %6 : i1 to i32
    %c0_i32_3 = arith.constant 0 : i32
    %8 = arith.cmpi ne, %7, %c0_i32_3 : i32
    scf.if %8 {
      %c0_6 = arith.constant 0 : index
      %c0_7 = arith.constant 0 : index
      %12 = vector.load %arg5[%c0_6, %c0_7] : memref<1x64xf32, #tpu.memory_space<vmem>>, vector<1x64xf32>
      %13 = arith.addf %12, %2 : vector<1x64xf32>
      %c0_8 = arith.constant 0 : index
      %c0_9 = arith.constant 0 : index
      %14 = vector.load %arg5[%c0_8, %c0_9] : memref<1x64xf32, #tpu.memory_space<vmem>>, vector<1x64xf32>
      tpu.vector_store %arg5[%c0_8, %c0_9], %13 {strides = array<i32>} : memref<1x64xf32, #tpu.memory_space<vmem>>, vector<1x64xf32>,
    } else {
    }
    %c0_i32_4 = arith.constant 0 : i32
    %9 = arith.cmpi eq, %arg2, %c0_i32_4 : i32
    %10 = arith.extui %9 : i1 to i32
    %c0_i32_5 = arith.constant 0 : i32
    %11 = arith.cmpi ne, %10, %c0_i32_5 : i32
    scf.if %11 {
      %c0_6 = arith.constant 0 : index
      %c0_7 = arith.constant 0 : index
      %12 = vector.load %arg5[%c0_6, %c0_7] : memref<1x64xf32, #tpu.memory_space<vmem>>, vector<1x64xf32>
      %c0_8 = arith.constant 0 : index
      %c0_9 = arith.constant 0 : index
      %13 = vector.load %arg4[%c0_8, %c0_9] : memref<1x64xf32, #tpu.memory_space<vmem>>, vector<1x64xf32>
      tpu.vector_store %arg4[%c0_8, %c0_9], %12 {strides = array<i32>} : memref<1x64xf32, #tpu.memory_space<vmem>>, vector<1x64xf32>,
    } else {
    }
    return
  }
  func.func @transform_0(%arg0: i32, %arg1: i32, %arg2: i32) -> (i32, i32) {
    %c1_i32 = arith.constant 1 : i32
    %0 = arith.muli %arg1, %c1_i32 : i32
    %1 = arith.addi %0, %arg2 : i32
    %c0_i32 = arith.constant 0 : i32
    return %1, %arg0 : i32, i32
  }
  func.func @transform_1(%arg0: i32, %arg1: i32, %arg2: i32) -> (i32, i32) {
    %c0_i32 = arith.constant 0 : i32
    return %arg1, %arg0 : i32, i32
  }
}

module attributes {stable_mosaic.version = 11 : i64} {
  func.func @_linear_kernel(%arg0: memref<8x128xf32, #tpu.memory_space<vmem>>, %arg1: memref<128x128xf32, #tpu.memory_space<vmem>>, %arg2: memref<1x128xf32, #tpu.memory_space<vmem>>, %arg3: memref<8x128xf32, #tpu.memory_space<vmem>>) attributes {dimension_semantics = [], scalar_prefetch = 0 : i64, scratch_operands = 0 : i64, tpu.core_type = #tpu.core_type<tc>} {
    %c0 = arith.constant 0 : index
    %c0_0 = arith.constant 0 : index
    %0 = vector.load %arg0[%c0, %c0_0] : memref<8x128xf32, #tpu.memory_space<vmem>>, vector<8x128xf32>
    %c0_1 = arith.constant 0 : index
    %c0_2 = arith.constant 0 : index
    %1 = vector.load %arg1[%c0_1, %c0_2] : memref<128x128xf32, #tpu.memory_space<vmem>>, vector<128x128xf32>
    %cst = arith.constant dense<0.000000e+00> : vector<8x128xf32>
    %2 = tpu.matmul %0, %1, %cst {dimension_numbers = #tpu.dot_dimension_numbers<[1], [0], [0], [1], [0, 0, 1, 1], [], []>} : vector<8x128xf32>, vector<128x128xf32>, vector<8x128xf32> -> vector<8x128xf32>
    %c0_3 = arith.constant 0 : index
    %c0_4 = arith.constant 0 : index
    %3 = vector.load %arg2[%c0_3, %c0_4] : memref<1x128xf32, #tpu.memory_space<vmem>>, vector<1x128xf32>
    %4 = vector.broadcast %3 : vector<1x128xf32> to vector<8x128xf32>
    %5 = arith.addf %2, %4 : vector<8x128xf32>
    %c0_5 = arith.constant 0 : index
    %c0_6 = arith.constant 0 : index
    %6 = vector.load %arg3[%c0_5, %c0_6] : memref<8x128xf32, #tpu.memory_space<vmem>>, vector<8x128xf32>
    tpu.vector_store %arg3[%c0_5, %c0_6], %5 {strides = array<i32>} : memref<8x128xf32, #tpu.memory_space<vmem>>, vector<8x128xf32>,
    return
  }
}

</mosaic_0001>

<llo_original>
// kernel: squeeze.1
$region0: #{squeeze.1}
  %s0 = inlined_call_operand.vmem [shape: f32[1,8,2,32], index: 0, kind: input, shape index: {}]
  %s1 = inlined_call_operand.vmem [shape: f32[8,64], index: 1, kind: output, shape index: {}]
  $region1: #{squeeze.1} parent=0
    #allocation0 [shape = 'u8[32768]{0}', space=vmem, size = 0x8000, scoped, tag = 'scoped mem for input reshape']
    %s3 = sshllo.u32 0, 2
    %s4 = smul.addr 2, 7
    %s5 = scalar_lea.vmem %s0, %s4
    %v6 = vld [vmem:[%s5] sm:%s3]
    %s7 = scalar_lea.vmem [#allocation0], 56
    %8 = vst [vmem:[%s7] sm:%s3] %v6
    %s9 = smul.addr 2, 6
    %s10 = scalar_lea.vmem %s0, %s9
    %v11 = vld [vmem:[%s10] sm:%s3]
    %s12 = scalar_lea.vmem [#allocation0], 48
    %13 = vst [vmem:[%s12] sm:%s3] %v11
    %s14 = smul.addr 2, 5
    %s15 = scalar_lea.vmem %s0, %s14
    %v16 = vld [vmem:[%s15] sm:%s3]
    %s17 = scalar_lea.vmem [#allocation0], 40
    %18 = vst [vmem:[%s17] sm:%s3] %v16
    %s19 = smul.addr 2, 4
    %s20 = scalar_lea.vmem %s0, %s19
    %v21 = vld [vmem:[%s20] sm:%s3]
    %s22 = scalar_lea.vmem [#allocation0], 32
    %23 = vst [vmem:[%s22] sm:%s3] %v21
    %s24 = smul.addr 2, 3
    %s25 = scalar_lea.vmem %s0, %s24
    %v26 = vld [vmem:[%s25] sm:%s3]
    %s27 = scalar_lea.vmem [#allocation0], 24
    %28 = vst [vmem:[%s27] sm:%s3] %v26
    %s29 = smul.addr 2, 2
    %s30 = scalar_lea.vmem %s0, %s29
    %v31 = vld [vmem:[%s30] sm:%s3]
    %s32 = scalar_lea.vmem [#allocation0], 16
    %33 = vst [vmem:[%s32] sm:%s3] %v31
    %s34 = scalar_lea.vmem %s0, 2
    %v35 = vld [vmem:[%s34] sm:%s3]
    %s36 = scalar_lea.vmem [#allocation0], 8
    %37 = vst [vmem:[%s36] sm:%s3] %v35
    %v38 = vld [vmem:[%s0] sm:%s3]
    %39 = vst [vmem:[#allocation0] sm:%s3] %v38
    %v40 = vld [vmem:[#allocation0] ss:$8 sm:$0xf]
    %v41 = vld [vmem:[#allocation0] ss:$8 sm:$0xf0]
    %vm42 = vcmask 1047556
    %v43 = vsel %vm42, %v41, %v40
    %vm44 = vcmask 261120
    %45 = vst.msk [vmem:[%s1] sm:$0xff] %vm44, %v43
    %s46 = scalar_lea.vmem [#allocation0], 1
    %v47 = vld [vmem:[%s46] ss:$8 sm:$0xf]
    %s48 = scalar_lea.vmem [#allocation0], 1
    %v49 = vld [vmem:[%s48] ss:$8 sm:$0xf0]
    %vm50 = vcmask 1047556
    %v51 = vsel %vm50, %v49, %v47
    %52 = vrot.lane.b32.xlu0 %v51, 32
    %v53 = vpop.permute.xlu0 %52
    %vm54 = vcmask 523520
    %55 = vst.msk [vmem:[%s1] sm:$0xff] %vm54, %v53

// kernel: readout_forward.2
$region0: #{readout_forward.2}
  #allocation0 [shape = 'u32[]', space=smem, size = 0x4, offset = 0x4, fixed_abs, tag = 'smem constant byte address 0x4 - core index']
  #allocation1 [shape = 'u32[144,128]{1,0:T(1,128)}', space=vmem, size = 0x12000, scoped, tag = 'internal scratch']
  #allocation2 [shape = 'f32[1,64]{1,0:T(1,128)}', space=vmem, size = 0x200, scoped, tag = 'scratch operand']
  %s0 = inlined_call_operand.vmem [shape: f32[8,64], index: 0, kind: input, shape index: {}]
  %s1 = inlined_call_operand.vmem [shape: f32[1,64], index: 1, kind: output, shape index: {}]
  %s2 = sld [smem:[#allocation0]]
  $region26: #{readout_forward.2} parent=0
    _
  %s4 = ssub.s32 1, %s2
  %s5 = scalar_select 0, %s4, %s2
  // Predicated region
  $region2: #{readout_forward.2} parent=0 // pred_check
    _
  $region3: #{readout_forward.2} parent=0 // pred_check_branch
    %7 = sbr.rel (0) target = $region5
  $region4: #{readout_forward.2} parent=0 // pred_region
    %s8 = sadd.s32 0, 0
    %p9 = scmp.lt.s32.totalorder %s8, 0
    %s10 = scalar_select %p9, %s8, 0
    %s11 = smul.addr %s10, 8
    %s12 = scalar_lea.vmem %s0, %s11
    %s13 = sadd.s32 0, 0
  $region5: #{readout_forward.2} parent=0 // pred_fallthru
    _
  %s14 = sadd.s32 0, 0
  %p15 = scmp.lt.s32.totalorder %s14, 0
  %s16 = scalar_select %p15, %s14, 0
  %s17 = smul.addr %s16, 8
  %s18 = scalar_lea.vmem %s0, %s17
  %s19 = sadd.s32 0, 0
  %p20 = scmp.lt.s32.totalorder %s19, 0
  %s21 = scalar_select %p20, %s19, 0
  %s22 = smul.addr %s21, 8
  %s23 = scalar_lea.vmem %s0, %s22
  %s24 = sadd.s32 0, 0
  %v25 = vld [vmem:[%s23] sm:$0xff]
  %vm26 = vcmask 523264
  %v27 = vsel %vm26, %v25, 0.0
  %v28 = vrot.slane %v27, 4
  %v29 = vadd.f32 %v27, %v28
  %v30 = vrot.slane %v29, 2
  %v31 = vadd.f32 %v29, %v30
  %v32 = vrot.slane %v31, 1
  %v33 = vadd.f32 %v31, %v32
  %p34 = scmp.eq.s32.totalorder 0, 0
  // Predicated region
  $region6: #{readout_forward.2} parent=0 // pred_check
    %p35 = pneg %p34
  $region7: #{readout_forward.2} parent=0 // pred_check_branch
    %37 = sbr.rel (%p35) target = $region9
  $region8: #{readout_forward.2} parent=0 // pred_region
    %vm38 = vcmask 516096
    %39 = vst.msk [vmem:[#allocation2] sm:$0x1] %vm38, %v33
  $region9: #{readout_forward.2} parent=0 // pred_fallthru
    _
  %p40 = scmp.gt.s32.totalorder 0, 0
  // Predicated region
  $region10: #{readout_forward.2} parent=0 // pred_check
    %p41 = pneg %p40
  $region11: #{readout_forward.2} parent=0 // pred_check_branch
    %43 = sbr.rel (%p41) target = $region13
  $region12: #{readout_forward.2} parent=0 // pred_region
    %v44 = vld [vmem:[#allocation2] sm:$0x1]
    %v45 = vadd.f32 %v44, %v33
    %vm46 = vcmask 516096
    %47 = vst.msk [vmem:[#allocation2] sm:$0x1] %vm46, %v45
  $region13: #{readout_forward.2} parent=0 // pred_fallthru
    _
  // Predicated region
  $region14: #{readout_forward.2} parent=0 // pred_check
    %p48 = pneg %p34
  $region15: #{readout_forward.2} parent=0 // pred_check_branch
    %50 = sbr.rel (%p48) target = $region17
  $region16: #{readout_forward.2} parent=0 // pred_region
    %v51 = vld [vmem:[#allocation2] sm:$0x1]
    %vm52 = vcmask 516096
    %53 = vst.msk [vmem:[%s1] sm:$0x1] %vm52, %v51
  $region17: #{readout_forward.2} parent=0 // pred_fallthru
    _
  // Predicated region
  $region18: #{readout_forward.2} parent=0 // pred_check
    _
  $region19: #{readout_forward.2} parent=0 // pred_check_branch
    %55 = sbr.rel (0) target = $region21
  $region20: #{readout_forward.2} parent=0 // pred_region
    _
  $region21: #{readout_forward.2} parent=0 // pred_fallthru
    _
  // Predicated region
  $region22: #{readout_forward.2} parent=0 // pred_check
    _
  $region23: #{readout_forward.2} parent=0 // pred_check_branch
    %57 = sbr.rel (0) target = $region25
  $region24: #{readout_forward.2} parent=0 // pred_region
    _
  $region25: #{readout_forward.2} parent=0 // pred_fallthru
    _

// kernel: readout_forward.3
$region0: #{readout_forward.3}
  #allocation0 [shape = 'u32[]', space=smem, size = 0x4, offset = 0x4, fixed_abs, tag = 'smem constant byte address 0x4 - core index']
  #allocation1 [shape = 'u32[144,128]{1,0:T(1,128)}', space=vmem, size = 0x12000, scoped, tag = 'internal scratch']
  %s0 = inlined_call_operand.vmem [shape: f32[8,128], index: 0, kind: input, shape index: {}]
  %s1 = inlined_call_operand.vmem [shape: f32[128,128], index: 1, kind: input, shape index: {}]
  %s2 = inlined_call_operand.vmem [shape: f32[1,128], index: 2, kind: input, shape index: {}]
  %s3 = inlined_call_operand.vmem [shape: f32[8,128], index: 3, kind: output, shape index: {}]
  %s4 = sld [smem:[#allocation0]]
  $region22: #{readout_forward.3} parent=0
    _
  %s6 = ssub.s32 1, %s4
  %s7 = scalar_select 0, %s6, %s4
  // Predicated region
  $region2: #{readout_forward.3} parent=0 // pred_check
    _
  $region3: #{readout_forward.3} parent=0 // pred_check_branch
    %9 = sbr.rel (0) target = $region5
  $region4: #{readout_forward.3} parent=0 // pred_region
    _
  $region5: #{readout_forward.3} parent=0 // pred_fallthru
    _
  // Predicated region
  $region6: #{readout_forward.3} parent=0 // pred_check
    _
  $region7: #{readout_forward.3} parent=0 // pred_check_branch
    %11 = sbr.rel (0) target = $region9
  $region8: #{readout_forward.3} parent=0 // pred_region
    _
  $region9: #{readout_forward.3} parent=0 // pred_fallthru
    _
  // Predicated region
  $region10: #{readout_forward.3} parent=0 // pred_check
    _
  $region11: #{readout_forward.3} parent=0 // pred_check_branch
    %13 = sbr.rel (0) target = $region13
  $region12: #{readout_forward.3} parent=0 // pred_region
    _
  $region13: #{readout_forward.3} parent=0 // pred_fallthru
    _
  %v14 = vld [vmem:[%s0] sm:$0xff]
  %v15 = vld [vmem:[%s1] sm:$0xff]
  %v16 = vld [vmem:[%s1 + $0x8] sm:$0xff]
  %v17 = vld [vmem:[%s1 + $0x10] sm:$0xff]
  %v18 = vld [vmem:[%s1 + $0x18] sm:$0xff]
  %v19 = vld [vmem:[%s1 + $0x20] sm:$0xff]
  %v20 = vld [vmem:[%s1 + $0x28] sm:$0xff]
  %v21 = vld [vmem:[%s1 + $0x30] sm:$0xff]
  %v22 = vld [vmem:[%s1 + $0x38] sm:$0xff]
  %v23 = vld [vmem:[%s1 + $0x40] sm:$0xff]
  %v24 = vld [vmem:[%s1 + $0x48] sm:$0xff]
  %v25 = vld [vmem:[%s1 + $0x50] sm:$0xff]
  %v26 = vld [vmem:[%s1 + $0x58] sm:$0xff]
  %v27 = vld [vmem:[%s1 + $0x60] sm:$0xff]
  %v28 = vld [vmem:[%s1 + $0x68] sm:$0xff]
  %v29 = vld [vmem:[%s1 + $0x70] sm:$0xff]
  %v30 = vld [vmem:[%s1 + $0x78] sm:$0xff]
  %v31 = vld [vmem:[%s2] sm:$0x1]
  %v33 = vlaneseq
  %v34 = vshrl.u32 %v33, 7
  %v35 = vsub.s32 0, %v34
  %v36 = vrot.slane %v31, %v35
  %38 = vmatprep.subr.mxu0 0.0
  %39 = vmatpush1.msra.mxu0 %v15
  %40 = vmatprep.subr.mxu0 0.0
  %41 = vmatpush1.msra.mxu0 %v16
  %42 = vmatprep.subr.mxu0 0.0
  %43 = vmatpush1.msra.mxu0 %v17
  %44 = vmatprep.subr.mxu0 0.0
  %45 = vmatpush1.msra.mxu0 %v18
  %46 = vmatprep.subr.mxu0 0.0
  %47 = vmatpush1.msra.mxu0 %v19
  %48 = vmatprep.subr.mxu0 0.0
  %49 = vmatpush1.msra.mxu0 %v20
  %50 = vmatprep.subr.mxu0 0.0
  %51 = vmatpush1.msra.mxu0 %v21
  %52 = vmatprep.subr.mxu0 0.0
  %53 = vmatpush1.msra.mxu0 %v22
  %54 = vmatprep.subr.mxu0 0.0
  %55 = vmatpush1.msra.mxu0 %v23
  %56 = vmatprep.subr.mxu0 0.0
  %57 = vmatpush1.msra.mxu0 %v24
  %58 = vmatprep.subr.mxu0 0.0
  %59 = vmatpush1.msra.mxu0 %v25
  %60 = vmatprep.subr.mxu0 0.0
  %61 = vmatpush1.msra.mxu0 %v26
  %62 = vmatprep.subr.mxu0 0.0
  %63 = vmatpush1.msra.mxu0 %v27
  %64 = vmatprep.subr.mxu0 0.0
  %65 = vmatpush1.msra.mxu0 %v28
  %66 = vmatprep.subr.mxu0 0.0
  %67 = vmatpush1.msra.mxu0 %v29
  %68 = vmatprep.subr.mxu0 0.0
  %69 = vmatpush1.msra.mxu0 %v30
  %70 = vmatprep.subr.mxu0 0.0
  %71 = vmatpush1.msra.mxu0 0.0
  %72 = vmatprep.subr.mxu0 0.0
  %73 = vmatpush1.msra.mxu0 0.0
  %74 = vmatprep.subr.mxu0 0.0
  %75 = vmatpush1.msra.mxu0 0.0
  %76 = vmatprep.subr.mxu0 0.0
  %77 = vmatpush1.msra.mxu0 0.0
  %78 = vmatprep.subr.mxu0 0.0
  %79 = vmatpush1.msra.mxu0 0.0
  %80 = vmatprep.subr.mxu0 0.0
  %81 = vmatpush1.msra.mxu0 0.0
  %82 = vmatprep.subr.mxu0 0.0
  %83 = vmatpush1.msra.mxu0 0.0
  %84 = vmatprep.subr.mxu0 0.0
  %85 = vmatpush1.msra.mxu0 0.0
  %86 = vmatprep.subr.mxu0 0.0
  %87 = vmatpush1.msra.mxu0 0.0
  %88 = vmatprep.subr.mxu0 0.0
  %89 = vmatpush1.msra.mxu0 0.0
  %90 = vmatprep.subr.mxu0 0.0
  %91 = vmatpush1.msra.mxu0 0.0
  %92 = vmatprep.subr.mxu0 0.0
  %93 = vmatpush1.msra.mxu0 0.0
  %94 = vmatprep.subr.mxu0 0.0
  %95 = vmatpush1.msra.mxu0 0.0
  %96 = vmatprep.subr.mxu0 0.0
  %97 = vmatpush1.msra.mxu0 0.0
  %98 = vmatprep.subr.mxu0 0.0
  %99 = vmatpush1.msra.mxu0 0.0
  %100 = vmatprep.subr.mxu0 0.0
  %101 = vmatpush1.msra.mxu0 0.0
  %102 = vmatprep.mubr.f32.mxu0 0.0
  %103 = vmatmul.mubr.f32.gmra.mrb[0].mxu0 %v14
  %v104 = vpop.f32.mrb[0].mxu0
  %v105 = vadd.f32 %v36, %v104
  %v106 = vpop.f32.mrb[0].mxu0
  %107 = vdwg.mxu0
  %108 = vst [vmem:[%s3] sm:$0xff] %v105
  // Predicated region
  $region14: #{readout_forward.3} parent=0 // pred_check
    _
  $region15: #{readout_forward.3} parent=0 // pred_check_branch
    %110 = sbr.rel (0) target = $region17
  $region16: #{readout_forward.3} parent=0 // pred_region
    _
  $region17: #{readout_forward.3} parent=0 // pred_fallthru
    _
  // Predicated region
  $region18: #{readout_forward.3} parent=0 // pred_check
    _
  $region19: #{readout_forward.3} parent=0 // pred_check_branch
    %112 = sbr.rel (0) target = $region21
  $region20: #{readout_forward.3} parent=0 // pred_region
    _
  $region21: #{readout_forward.3} parent=0 // pred_fallthru
    _

</llo_original>
